<compile_context>
chip_gen: v5e
topology: v5e:2x2
jax: 0.10.0
libtpu: 0.0.40
codegen_flags: <defaults>
</compile_context>

<pallas_src>
import jax
import jax.numpy as jnp
from jax.experimental import pallas as pl
from jax.experimental.pallas import tpu as pltpu

_EPS = 1e-6
_LANE_WIDTH = 1024                      # lane-dense last dim (multiple of 128)
_TINY_FALLBACK_ELEMS = 16 * _LANE_WIDTH  # below this, plain jnp is cheaper


def _round_up(n, m):
    return ((n + m - 1) // m) * m


def _max_block_rows():
    """Largest row-block: 2 MiB tiles everywhere, 4 MiB on v6e/v7x."""
    try:
        kind = jax.devices()[0].device_kind.lower()
    except Exception:
        return 512
    return 1024 if ("v6" in kind or "v7" in kind) else 512


def _preproc_kernel(params_ref, x_ref, o_ref):
    # params_ref: SMEM (3,) f32 via scalar prefetch -> [1 - alpha, relu(beta), gamma]
    one_minus_alpha = params_ref[0]
    beta_relu = params_ref[1]
    gamma = params_ref[2]

    # Cast at the load so HBM traffic stays in the input's native width.
    x = jnp.clip(x_ref[...].astype(jnp.float32), _EPS, 1.0 - _EPS)

    # gamma * (1 - x)^beta * x^(1 - alpha), fused into a single exp:
    #   exp(beta * log1p(-x) + (1 - alpha) * log(x))
    # x is strictly inside (0, 1) after the clamp, so both logs are finite.
    # TODO(synk): if a v7x bundle dump shows the EUP slot saturated, the logs
    # could be evaluated in bf16 (v6e/v7x EUP supports bf16) after validating
    # accuracy down to x = 1e-6.
    y = gamma * jnp.exp(beta_relu * jnp.log1p(-x) + one_minus_alpha * jnp.log(x))
    o_ref[...] = y.astype(o_ref.dtype)


def _elementwise(x, one_minus_alpha, beta_relu, gamma, out_dtype):
    """Plain-jnp path for tiny inputs and the ragged (<1024 elem) tail."""
    xf = jnp.clip(jnp.asarray(x).astype(jnp.float32), _EPS, 1.0 - _EPS)
    y = gamma * jnp.exp(beta_relu * jnp.log1p(-xf) + one_minus_alpha * jnp.log(xf))
    return y.astype(out_dtype)


def _pallas_2d(x2d, params, out_dtype):
    """Run the kernel over a (rows, 1024) slab. rows >= 16 guaranteed."""
    rows, width = x2d.shape
    assert width == _LANE_WIDTH
    max_rows = _max_block_rows()

    if rows <= 16:
        block_rows = rows                                   # single full-dim block
    elif rows <= 2 * max_rows:
        # >= 2 grid steps so both v7x TensorCores get work; multiple of 16
        # satisfies the sublane minimum for f32/bf16/f16.
        block_rows = _round_up(pl.cdiv(rows, 2), 16)
    else:
        block_rows = max_rows
    grid = (pl.cdiv(rows, block_rows),)

    n = rows * width
    in_bytes = n * jnp.dtype(x2d.dtype).itemsize
    out_bytes = n * jnp.dtype(out_dtype).itemsize
    cost = pl.CostEstimate(
        flops=5 * n,                 # clamp + 2 mul + add + scale
        transcendentals=3 * n,       # log1p, log, exp
        bytes_accessed=in_bytes + out_bytes,
    )

    return pl.pallas_call(
        _preproc_kernel,
        out_shape=jax.ShapeDtypeStruct((rows, _LANE_WIDTH), out_dtype),
        grid_spec=pltpu.PrefetchScalarGridSpec(
            num_scalar_prefetch=1,   # params -> SMEM, passed to index_maps
            grid=grid,
            in_specs=[
                pl.BlockSpec((block_rows, _LANE_WIDTH), lambda i, p: (i, 0)),
            ],
            out_specs=pl.BlockSpec((block_rows, _LANE_WIDTH), lambda i, p: (i, 0)),
        ),
        compiler_params=pltpu.CompilerParams(
            dimension_semantics=("parallel",),   # shard row blocks across TCs (v7x)
        ),
        cost_estimate=cost,
    )(params, x2d)


def custom_preprocessing(x, alpha, beta, gamma):
    """Elementwise CustomPreprocessing.forward for an arbitrary-shaped x."""
    x = jnp.asarray(x)
    orig_shape = x.shape
    # Float semantics: keep floating inputs in their own width; promote ints.
    out_dtype = x.dtype if jnp.issubdtype(x.dtype, jnp.floating) else jnp.float32

    # Hoist all scalar prep out of the kernel body.
    alpha = jnp.asarray(alpha, dtype=jnp.float32)
    beta = jnp.asarray(beta, dtype=jnp.float32)
    gamma = jnp.asarray(gamma, dtype=jnp.float32)
    one_minus_alpha = 1.0 - alpha
    beta_relu = jnp.maximum(beta, 0.0)

    total = int(x.size)
    if total == 0:
        return jnp.zeros(orig_shape, out_dtype)

    if total < _TINY_FALLBACK_ELEMS:
        # Launch / layout-plumbing overhead dominates; plain jnp wins.
        return _elementwise(x, one_minus_alpha, beta_relu, gamma, out_dtype)

    params = jnp.stack([one_minus_alpha, beta_relu, gamma])

    xf = x.reshape(-1)
    if not jnp.issubdtype(x.dtype, jnp.floating):
        xf = xf.astype(jnp.float32)

    bulk = (total // _LANE_WIDTH) * _LANE_WIDTH
    rows = bulk // _LANE_WIDTH

    out_bulk = _pallas_2d(xf[:bulk].reshape(rows, _LANE_WIDTH), params, out_dtype)
    out_flat = out_bulk.reshape(-1)

    tail = total - bulk
    if tail:
        # Sub-1024-element ragged tail: cheaper in plain jnp than a full-array
        # jnp.pad (which would add an extra full HBM read+write pass).
        out_tail = _elementwise(xf[bulk:], one_minus_alpha, beta_relu, gamma, out_dtype)
        out_flat = jnp.concatenate([out_flat, out_tail])

    return out_flat.reshape(orig_shape)


def _reference(x, alpha, beta, gamma):
    """Independent reference using the pow form (mirrors the PyTorch module)."""
    xf = jnp.clip(jnp.asarray(x).astype(jnp.float32), _EPS, 1.0 - _EPS)
    b = jnp.maximum(jnp.float32(beta), 0.0)
    return jnp.float32(gamma) * (1.0 - xf) ** b * xf ** (1.0 - jnp.float32(alpha))


if __name__ == "__main__":
    key = jax.random.PRNGKey(0)

    # Deterministic synthetic scalar parameters (module __init__ takes floats).
    alpha, beta, gamma = 0.5, 1.25, 2.0
    k0, k1, k2 = jax.random.split(key, 3)

    # 1) Aligned Pallas path, multi-block grid (total % 1024 == 0, rows = 32).
    x1 = jax.random.uniform(k0, (256, 128), dtype=jnp.float32)
    out1 = jax.block_until_ready(custom_preprocessing(x1, alpha, beta, gamma))
    ref1 = _reference(x1, alpha, beta, gamma)
    assert out1.shape == x1.shape and out1.dtype == jnp.float32
    assert jnp.allclose(out1, ref1, rtol=2e-5, atol=1e-6), "mismatch (aligned path)"

    # 2) bf16 input, ragged total (Pallas bulk + jnp tail; in-kernel dtype cast).
    x2 = jax.random.uniform(k1, (64, 513), dtype=jnp.float32).astype(jnp.bfloat16)
    out2 = jax.block_until_ready(custom_preprocessing(x2, alpha, beta, gamma))
    ref2 = _reference(x2, alpha, beta, gamma)
    assert out2.shape == x2.shape and out2.dtype == jnp.bfloat16
    assert jnp.allclose(out2.astype(jnp.float32), ref2, rtol=2e-2, atol=2e-3), \
        "mismatch (bf16 ragged path)"

    # 3) Tiny input exercising the fallback path (non-aligned dims).
    x3 = jax.random.uniform(k2, (7, 3, 25), dtype=jnp.float32)
    out3 = jax.block_until_ready(custom_preprocessing(x3, alpha, beta, gamma))
    ref3 = _reference(x3, alpha, beta, gamma)
    assert out3.shape == x3.shape
    assert jnp.allclose(out3, ref3, rtol=2e-5, atol=1e-6), "mismatch (tiny path)"

    print("KERNEL_OK")
</pallas_src>

<mosaic_0001>
module attributes {stable_mosaic.version = 11 : i64} {
  func.func @_preproc_kernel(%arg0: i32, %arg1: memref<3xf32, #tpu.memory_space<smem>>, %arg2: memref<16x1024xf32, #tpu.memory_space<vmem>>, %arg3: memref<16x1024xf32, #tpu.memory_space<vmem>>) attributes {dimension_semantics = [#tpu.dimension_semantics<parallel>], iteration_bounds = array<i64: 2>, scalar_prefetch = 1 : i64, scratch_operands = 0 : i64, tpu.core_type = #tpu.core_type<tc>, window_params = [{transform_indices = @transform_0, window_bounds = array<i64: 16, 1024>}, {transform_indices = @transform_1, window_bounds = array<i64: 16, 1024>}]} {
    %c0 = arith.constant 0 : index
    %0 = memref.load %arg1[%c0] : memref<3xf32, #tpu.memory_space<smem>>
    %c1 = arith.constant 1 : index
    %1 = memref.load %arg1[%c1] : memref<3xf32, #tpu.memory_space<smem>>
    %c2 = arith.constant 2 : index
    %2 = memref.load %arg1[%c2] : memref<3xf32, #tpu.memory_space<smem>>
    %c0_0 = arith.constant 0 : index
    %c0_1 = arith.constant 0 : index
    %3 = vector.load %arg2[%c0_0, %c0_1] : memref<16x1024xf32, #tpu.memory_space<vmem>>, vector<16x1024xf32>
    %cst = arith.constant 9.99999997E-7 : f32
    %cst_2 = arith.constant 0.999998986 : f32
    %4 = vector.broadcast %cst : f32 to vector<16x1024xf32>
    %5 = arith.maximumf %4, %3 : vector<16x1024xf32>
    %6 = vector.broadcast %cst_2 : f32 to vector<16x1024xf32>
    %7 = arith.minimumf %6, %5 : vector<16x1024xf32>
    %cst_3 = arith.constant 0.000000e+00 : f32
    %8 = vector.broadcast %cst_3 : f32 to vector<16x1024xf32>
    %9 = arith.subf %8, %7 : vector<16x1024xf32>
    %10 = math.log1p %9 : vector<16x1024xf32>
    %11 = vector.broadcast %1 : f32 to vector<16x1024xf32>
    %12 = arith.mulf %11, %10 : vector<16x1024xf32>
    %13 = math.log %7 : vector<16x1024xf32>
    %14 = vector.broadcast %0 : f32 to vector<16x1024xf32>
    %15 = arith.mulf %14, %13 : vector<16x1024xf32>
    %16 = arith.addf %12, %15 : vector<16x1024xf32>
    %17 = math.exp %16 : vector<16x1024xf32>
    %18 = vector.broadcast %2 : f32 to vector<16x1024xf32>
    %19 = arith.mulf %18, %17 : vector<16x1024xf32>
    %c0_4 = arith.constant 0 : index
    %c0_5 = arith.constant 0 : index
    %20 = vector.load %arg3[%c0_4, %c0_5] : memref<16x1024xf32, #tpu.memory_space<vmem>>, vector<16x1024xf32>
    tpu.vector_store %arg3[%c0_4, %c0_5], %19 {strides = array<i32>} : memref<16x1024xf32, #tpu.memory_space<vmem>>, vector<16x1024xf32>,
    return
  }
  func.func @transform_0(%arg0: i32, %arg1: memref<3xf32, #tpu.memory_space<smem>>) -> (i32, i32) {
    %c0_i32 = arith.constant 0 : i32
    %c0_i32_0 = arith.constant 0 : i32
    return %arg0, %c0_i32 : i32, i32
  }
  func.func @transform_1(%arg0: i32, %arg1: memref<3xf32, #tpu.memory_space<smem>>) -> (i32, i32) {
    %c0_i32 = arith.constant 0 : i32
    %c0_i32_0 = arith.constant 0 : i32
    return %arg0, %c0_i32 : i32, i32
  }
}

</mosaic_0001>

<llo_original>
// kernel: tpu_custom_call.1
$region0: #{tpu_custom_call.1}
  #allocation0 [shape = 'u32[]', space=smem, size = 0x4, offset = 0x4, fixed_abs, tag = 'smem constant byte address 0x4 - core index']
  #allocation1 [shape = 'u32[72,128]{1,0:T(1,128)}', space=vmem, size = 0x9000, scoped, tag = 'internal scratch']
  #allocation2 [shape = 's32[1]{0}', space=sflag, size = 0x4, scoped, tag = 'scoped memory for tpu_custom_call.1']
  #allocation3 [shape = 'u8[512]{0}', space=smem, size = 0x200, scoped, tag = 'prefetched SMEM operand 0']
  %s0 = inlined_call_operand.hbm [shape: f32[3], index: 0, kind: input, shape index: {}]
  %s1 = inlined_call_operand.hbm [shape: f32[32,1024], index: 1, kind: input, shape index: {}]
  %s2 = inlined_call_operand.hbm [shape: f32[32,1024], index: 2, kind: output, shape index: {}]
  %s3 = sld [smem:[#allocation0]]
  $region41: #{tpu_custom_call.1} parent=0
    _
  %s5 = ssub.s32 1, %s3
  %s6 = scalar_select 0, %s5, %s3
  %s8 = sshll.u32 %s0, 4
  %s9 = int_to_ptr.hbm [resolvable:$true] %s8
  %11 = dma.hbm_to_smem %s9, 16, [#allocation3], [#allocation2]
  %13 = dma.done [#allocation2], 16
  %14 = sfence
  $region1: #{tpu_custom_call.1} parent=0
    #allocation4 [shape = 'u8[131072]{0}', space=vmem, size = 0x20000, scoped, tag = 'input window, operand 1']
    #allocation5 [shape = 's32[2]{0}', space=sflag, size = 0x8, scoped, tag = 'scoped memory for tpu_custom_call.1']
    #allocation6 [shape = 's32[2]{0}', space=sflag, size = 0x8, scoped, tag = 'scoped memory for tpu_custom_call.1']
    #allocation7 [shape = 'u8[131072]{0}', space=vmem, size = 0x20000, scoped, tag = 'output window, operand 0']
    %15 = vsyncpa [#allocation5], 0
    %s16 = scalar_lea.sflag [#allocation5], 1
    %17 = vsyncpa %s16, 0
    %18 = vsyncpa [#allocation6], 0
    %s19 = scalar_lea.sflag [#allocation6], 1
    %20 = vsyncpa %s19, 0
    loop: start=0, step=1, limit=4
    $region2: #{tpu_custom_call.1} parent=1 // loop_pre_header
      _
    $region3: #{tpu_custom_call.1} parent=1 // loop_header
      %s22 = sphi 0, %s26
      %p23 = scmp.ge.s32.totalorder %s22, 4
      %s32 = sphi 0, %s34
      %s35 = sphi 0, %s32
      %s36 = sphi 0, %s35
      %s52 = sphi 0, %s36
      %s58 = sphi 0, %s60
      %s61 = sphi 0, %s58
      %s62 = sphi 0, %s61
      %s78 = sphi 0, %s62
    $region4: #{tpu_custom_call.1} parent=1 // loop_header_branch
      %25 = sbr.rel (%p23) target = $region8
    $region5: #{tpu_custom_call.1} parent=1 // loop_body
      %s27 = ssub.s32 %s22, 1
      %s28 = ssub.s32 %s22, 2
      %s29 = sadd.s32 %s22, 1
      %s30 = ssub.s32 %s22, %s29
      %p31 = scmp.eq.s32.totalorder %s30, 0
      %s33 = sadd.s32 %s32, 1
      %s34 = scalar_select %p31, %s32, %s33
      %p37 = pneg %p31
      %p38 = scmp.eq.s32.totalorder %s22, 1
      %p39 = por %p37, %p38
      %p40 = scmp.ne.s32.totalorder %s32, %s35
      %p41 = scmp.eq.s32.totalorder %s22, 0
      %p42 = por %p40, %p41
      %p43 = scmp.ne.s32.totalorder %s32, %s35
      %p44 = scmp.eq.s32.totalorder %s27, 1
      %p45 = por %p43, %p44
      %p46 = scmp.ne.s32.totalorder %s35, %s36
      %p47 = scmp.eq.s32.totalorder %s27, 0
      %p48 = por %p46, %p47
      %p49 = scmp.ne.s32.totalorder %s35, %s36
      %p50 = scmp.eq.s32.totalorder %s28, 1
      %p51 = por %p49, %p50
      %p53 = scmp.ne.s32.totalorder %s36, %s52
      %p54 = scmp.eq.s32.totalorder %s28, 0
      %p55 = por %p53, %p54
      %s56 = ssub.s32 %s22, %s29
      %p57 = scmp.eq.s32.totalorder %s56, 0
      %s59 = sadd.s32 %s58, 1
      %s60 = scalar_select %p57, %s58, %s59
      %p63 = pneg %p57
      %p64 = scmp.eq.s32.totalorder %s22, 1
      %p65 = por %p63, %p64
      %p66 = scmp.ne.s32.totalorder %s58, %s61
      %p67 = scmp.eq.s32.totalorder %s22, 0
      %p68 = por %p66, %p67
      %p69 = scmp.ne.s32.totalorder %s58, %s61
      %p70 = scmp.eq.s32.totalorder %s27, 1
      %p71 = por %p69, %p70
      %p72 = scmp.ne.s32.totalorder %s61, %s62
      %p73 = scmp.eq.s32.totalorder %s27, 0
      %p74 = por %p72, %p73
      %p75 = scmp.ne.s32.totalorder %s61, %s62
      %p76 = scmp.eq.s32.totalorder %s28, 1
      %p77 = por %p75, %p76
      %p79 = scmp.ne.s32.totalorder %s62, %s78
      %p80 = scmp.eq.s32.totalorder %s28, 0
      %p81 = por %p79, %p80
      %p82 = scmp.le.s32.totalorder 1, %s22
      %p83 = scmp.lt.s32.totalorder %s22, 3
      %p84 = pnand %p82, %p83
      %p85 = pneg %p84
      // Predicated region
      $region9: #{tpu_custom_call.1} parent=5 // pred_check
        _
      $region10: #{tpu_custom_call.1} parent=5 // pred_check_branch
        %87 = sbr.rel (%p84) target = $region12
      $region11: #{tpu_custom_call.1} parent=5 // pred_region
        %s88 = ssub.s32 %s22, 1
      $region12: #{tpu_custom_call.1} parent=5 // pred_fallthru
        _
      %p89 = scmp.lt.s32.totalorder %s22, 2
      // Predicated region
      $region13: #{tpu_custom_call.1} parent=5 // pred_check
        %p90 = pneg %p89
      $region14: #{tpu_custom_call.1} parent=5 // pred_check_branch
        %92 = sbr.rel (%p90) target = $region16
      $region15: #{tpu_custom_call.1} parent=5 // pred_region
        // Predicated region
        $region17: #{tpu_custom_call.1} parent=15 // pred_check
          %p93 = pneg %p42
        $region18: #{tpu_custom_call.1} parent=15 // pred_check_branch
          %95 = sbr.rel (%p93) target = $region20
        $region19: #{tpu_custom_call.1} parent=15 // pred_region
          %s96 = sand.u32 %s32, 1
          %s97 = scalar_lea.sflag [#allocation5], %s96
          %s98 = sand.u32 %s32, 1
          %s99 = smul.addr %s98, 128
          %s100 = scalar_lea.vmem [#allocation4], %s99
          %s101 = smul.u32 2, %s22
          %103 = vsyncadd %s97, 0
          %s104 = smul.addr %s101, 8
          %s105 = smul.addr %s104, 8
          %s106 = scalar_lea.hbm %s1, %s105
          %s107 = sshll.u32 %s106, 4
          %s108 = int_to_ptr.hbm [resolvable:$true] %s107
          %s109 = sshll.u32 %s100, 4
          %s110 = int_to_ptr.vmem [resolvable:$true] %s109
          %115 = dma.hbm_to_vmem [thread:$0]  %s108, 2048, %s110, %s97, 1024, 1024, 64
        $region20: #{tpu_custom_call.1} parent=15 // pred_fallthru
          _
      $region16: #{tpu_custom_call.1} parent=5 // pred_fallthru
        _
      %p116 = scmp.le.s32.totalorder 1, %s22
      %p117 = scmp.lt.s32.totalorder %s22, 3
      %p118 = pnand %p116, %p117
      %p119 = pneg %p118
      // Predicated region
      $region21: #{tpu_custom_call.1} parent=5 // pred_check
        _
      $region22: #{tpu_custom_call.1} parent=5 // pred_check_branch
        %121 = sbr.rel (%p118) target = $region24
      $region23: #{tpu_custom_call.1} parent=5 // pred_region
        %s122 = ssub.s32 %s22, 1
        %s123 = sand.u32 %s35, 1
        %s124 = scalar_lea.sflag [#allocation5], %s123
        %s125 = sand.u32 %s35, 1
        %s126 = smul.addr %s125, 128
        %s127 = scalar_lea.vmem [#allocation4], %s126
        // Predicated region
        $region25: #{tpu_custom_call.1} parent=23 // pred_check
          %p128 = pneg %p48
        $region26: #{tpu_custom_call.1} parent=23 // pred_check_branch
          %130 = sbr.rel (%p128) target = $region28
        $region27: #{tpu_custom_call.1} parent=23 // pred_region
          %132 = dma.done %s124, 2048
        $region28: #{tpu_custom_call.1} parent=23 // pred_fallthru
          _
        %s133 = sand.u32 %s35, 1
        %s134 = scalar_lea.sflag [#allocation5], %s133
        %s135 = sand.u32 %s35, 1
        %s136 = smul.addr %s135, 128
        %s137 = scalar_lea.vmem [#allocation4], %s136
        %p138 = pneg %p48
        %p139 = pneg %p45
        %p140 = pneg %p74
        %p141 = pneg %p71
        %s142 = sand.u32 %s61, 1
        %s143 = scalar_lea.sflag [#allocation6], %s142
        %s144 = sand.u32 %s61, 1
        %s145 = smul.addr %s144, 128
        %s146 = scalar_lea.vmem [#allocation7], %s145
        %s147 = smul.u32 2, %s27
        %s148 = smul.u32 2, %s27
        %s149 = sld [smem:[#allocation3]]
        %s150 = sld [smem:[#allocation3 + $0x1]]
        %s151 = sld [smem:[#allocation3 + $0x2]]
        %v152 = vld [vmem:[%s127] sm:$0xff]
        %v153 = vld [vmem:[%s127 + $0x8] sm:$0xff]
        %v154 = vld [vmem:[%s127 + $0x10] sm:$0xff]
        %v155 = vld [vmem:[%s127 + $0x18] sm:$0xff]
        %v156 = vld [vmem:[%s127 + $0x20] sm:$0xff]
        %v157 = vld [vmem:[%s127 + $0x28] sm:$0xff]
        %v158 = vld [vmem:[%s127 + $0x30] sm:$0xff]
        %v159 = vld [vmem:[%s127 + $0x38] sm:$0xff]
        %v160 = vld [vmem:[%s127 + $0x40] sm:$0xff]
        %v161 = vld [vmem:[%s127 + $0x48] sm:$0xff]
        %v162 = vld [vmem:[%s127 + $0x50] sm:$0xff]
        %v163 = vld [vmem:[%s127 + $0x58] sm:$0xff]
        %v164 = vld [vmem:[%s127 + $0x60] sm:$0xff]
        %v165 = vld [vmem:[%s127 + $0x68] sm:$0xff]
        %v166 = vld [vmem:[%s127 + $0x70] sm:$0xff]
        %v167 = vld [vmem:[%s127 + $0x78] sm:$0xff]
        %v168 = vmax.f32 %v152, 1e-06
        %v169 = vmax.f32 %v153, 1e-06
        %v170 = vmax.f32 %v154, 1e-06
        %v171 = vmax.f32 %v155, 1e-06
        %v172 = vmax.f32 %v156, 1e-06
        %v173 = vmax.f32 %v157, 1e-06
        %v174 = vmax.f32 %v158, 1e-06
        %v175 = vmax.f32 %v159, 1e-06
        %v176 = vmax.f32 %v160, 1e-06
        %v177 = vmax.f32 %v161, 1e-06
        %v178 = vmax.f32 %v162, 1e-06
        %v179 = vmax.f32 %v163, 1e-06
        %v180 = vmax.f32 %v164, 1e-06
        %v181 = vmax.f32 %v165, 1e-06
        %v182 = vmax.f32 %v166, 1e-06
        %v183 = vmax.f32 %v167, 1e-06
        %v184 = vmin.f32 %v168, 0.999999
        %v185 = vmin.f32 %v169, 0.999999
        %v186 = vmin.f32 %v170, 0.999999
        %v187 = vmin.f32 %v171, 0.999999
        %v188 = vmin.f32 %v172, 0.999999
        %v189 = vmin.f32 %v173, 0.999999
        %v190 = vmin.f32 %v174, 0.999999
        %v191 = vmin.f32 %v175, 0.999999
        %v192 = vmin.f32 %v176, 0.999999
        %v193 = vmin.f32 %v177, 0.999999
        %v194 = vmin.f32 %v178, 0.999999
        %v195 = vmin.f32 %v179, 0.999999
        %v196 = vmin.f32 %v180, 0.999999
        %v197 = vmin.f32 %v181, 0.999999
        %v198 = vmin.f32 %v182, 0.999999
        %v199 = vmin.f32 %v183, 0.999999
        %v200 = vsub.f32 0.0, %v184
        %v201 = vsub.f32 0.0, %v185
        %v202 = vsub.f32 0.0, %v186
        %v203 = vsub.f32 0.0, %v187
        %v204 = vsub.f32 0.0, %v188
        %v205 = vsub.f32 0.0, %v189
        %v206 = vsub.f32 0.0, %v190
        %v207 = vsub.f32 0.0, %v191
        %v208 = vsub.f32 0.0, %v192
        %v209 = vsub.f32 0.0, %v193
        %v210 = vsub.f32 0.0, %v194
        %v211 = vsub.f32 0.0, %v195
        %v212 = vsub.f32 0.0, %v196
        %v213 = vsub.f32 0.0, %v197
        %v214 = vsub.f32 0.0, %v198
        %v215 = vsub.f32 0.0, %v199
        %v216 = vadd.f32 %v200, 1.0
        %v217 = vlog2.pop %v216
        %v218 = vmul.f32 %v217, 0.6931472
        %v219 = vmul.f32 -0.5, %v200
        %v220 = vadd.f32 %v219, 1.0
        %v221 = vmul.f32 %v220, %v200
        %v222 = vand.u32 2147483647, %v200
        %vm223 = vcmp.lt.f32.partialorder %v222, 0.0004427343
        %v224 = vsel %vm223, %v221, %v218
        %v225 = vadd.f32 %v201, 1.0
        %v226 = vlog2.pop %v225
        %v227 = vmul.f32 %v226, 0.6931472
        %v228 = vmul.f32 -0.5, %v201
        %v229 = vadd.f32 %v228, 1.0
        %v230 = vmul.f32 %v229, %v201
        %v231 = vand.u32 2147483647, %v201
        %vm232 = vcmp.lt.f32.partialorder %v231, 0.0004427343
        %v233 = vsel %vm232, %v230, %v227
        %v234 = vadd.f32 %v202, 1.0
        %v235 = vlog2.pop %v234
        %v236 = vmul.f32 %v235, 0.6931472
        %v237 = vmul.f32 -0.5, %v202
        %v238 = vadd.f32 %v237, 1.0
        %v239 = vmul.f32 %v238, %v202
        %v240 = vand.u32 2147483647, %v202
        %vm241 = vcmp.lt.f32.partialorder %v240, 0.0004427343
        %v242 = vsel %vm241, %v239, %v236
        %v243 = vadd.f32 %v203, 1.0
        %v244 = vlog2.pop %v243
        %v245 = vmul.f32 %v244, 0.6931472
        %v246 = vmul.f32 -0.5, %v203
        %v247 = vadd.f32 %v246, 1.0
        %v248 = vmul.f32 %v247, %v203
        %v249 = vand.u32 2147483647, %v203
        %vm250 = vcmp.lt.f32.partialorder %v249, 0.0004427343
        %v251 = vsel %vm250, %v248, %v245
        %v252 = vadd.f32 %v204, 1.0
        %v253 = vlog2.pop %v252
        %v254 = vmul.f32 %v253, 0.6931472
        %v255 = vmul.f32 -0.5, %v204
        %v256 = vadd.f32 %v255, 1.0
        %v257 = vmul.f32 %v256, %v204
        %v258 = vand.u32 2147483647, %v204
        %vm259 = vcmp.lt.f32.partialorder %v258, 0.0004427343
        %v260 = vsel %vm259, %v257, %v254
        %v261 = vadd.f32 %v205, 1.0
        %v262 = vlog2.pop %v261
        %v263 = vmul.f32 %v262, 0.6931472
        %v264 = vmul.f32 -0.5, %v205
        %v265 = vadd.f32 %v264, 1.0
        %v266 = vmul.f32 %v265, %v205
        %v267 = vand.u32 2147483647, %v205
        %vm268 = vcmp.lt.f32.partialorder %v267, 0.0004427343
        %v269 = vsel %vm268, %v266, %v263
        %v270 = vadd.f32 %v206, 1.0
        %v271 = vlog2.pop %v270
        %v272 = vmul.f32 %v271, 0.6931472
        %v273 = vmul.f32 -0.5, %v206
        %v274 = vadd.f32 %v273, 1.0
        %v275 = vmul.f32 %v274, %v206
        %v276 = vand.u32 2147483647, %v206
        %vm277 = vcmp.lt.f32.partialorder %v276, 0.0004427343
        %v278 = vsel %vm277, %v275, %v272
        %v279 = vadd.f32 %v207, 1.0
        %v280 = vlog2.pop %v279
        %v281 = vmul.f32 %v280, 0.6931472
        %v282 = vmul.f32 -0.5, %v207
        %v283 = vadd.f32 %v282, 1.0
        %v284 = vmul.f32 %v283, %v207
        %v285 = vand.u32 2147483647, %v207
        %vm286 = vcmp.lt.f32.partialorder %v285, 0.0004427343
        %v287 = vsel %vm286, %v284, %v281
        %v288 = vadd.f32 %v208, 1.0
        %v289 = vlog2.pop %v288
        %v290 = vmul.f32 %v289, 0.6931472
        %v291 = vmul.f32 -0.5, %v208
        %v292 = vadd.f32 %v291, 1.0
        %v293 = vmul.f32 %v292, %v208
        %v294 = vand.u32 2147483647, %v208
        %vm295 = vcmp.lt.f32.partialorder %v294, 0.0004427343
        %v296 = vsel %vm295, %v293, %v290
        %v297 = vadd.f32 %v209, 1.0
        %v298 = vlog2.pop %v297
        %v299 = vmul.f32 %v298, 0.6931472
        %v300 = vmul.f32 -0.5, %v209
        %v301 = vadd.f32 %v300, 1.0
        %v302 = vmul.f32 %v301, %v209
        %v303 = vand.u32 2147483647, %v209
        %vm304 = vcmp.lt.f32.partialorder %v303, 0.0004427343
        %v305 = vsel %vm304, %v302, %v299
        %v306 = vadd.f32 %v210, 1.0
        %v307 = vlog2.pop %v306
        %v308 = vmul.f32 %v307, 0.6931472
        %v309 = vmul.f32 -0.5, %v210
        %v310 = vadd.f32 %v309, 1.0
        %v311 = vmul.f32 %v310, %v210
        %v312 = vand.u32 2147483647, %v210
        %vm313 = vcmp.lt.f32.partialorder %v312, 0.0004427343
        %v314 = vsel %vm313, %v311, %v308
        %v315 = vadd.f32 %v211, 1.0
        %v316 = vlog2.pop %v315
        %v317 = vmul.f32 %v316, 0.6931472
        %v318 = vmul.f32 -0.5, %v211
        %v319 = vadd.f32 %v318, 1.0
        %v320 = vmul.f32 %v319, %v211
        %v321 = vand.u32 2147483647, %v211
        %vm322 = vcmp.lt.f32.partialorder %v321, 0.0004427343
        %v323 = vsel %vm322, %v320, %v317
        %v324 = vadd.f32 %v212, 1.0
        %v325 = vlog2.pop %v324
        %v326 = vmul.f32 %v325, 0.6931472
        %v327 = vmul.f32 -0.5, %v212
        %v328 = vadd.f32 %v327, 1.0
        %v329 = vmul.f32 %v328, %v212
        %v330 = vand.u32 2147483647, %v212
        %vm331 = vcmp.lt.f32.partialorder %v330, 0.0004427343
        %v332 = vsel %vm331, %v329, %v326
        %v333 = vadd.f32 %v213, 1.0
        %v334 = vlog2.pop %v333
        %v335 = vmul.f32 %v334, 0.6931472
        %v336 = vmul.f32 -0.5, %v213
        %v337 = vadd.f32 %v336, 1.0
        %v338 = vmul.f32 %v337, %v213
        %v339 = vand.u32 2147483647, %v213
        %vm340 = vcmp.lt.f32.partialorder %v339, 0.0004427343
        %v341 = vsel %vm340, %v338, %v335
        %v342 = vadd.f32 %v214, 1.0
        %v343 = vlog2.pop %v342
        %v344 = vmul.f32 %v343, 0.6931472
        %v345 = vmul.f32 -0.5, %v214
        %v346 = vadd.f32 %v345, 1.0
        %v347 = vmul.f32 %v346, %v214
        %v348 = vand.u32 2147483647, %v214
        %vm349 = vcmp.lt.f32.partialorder %v348, 0.0004427343
        %v350 = vsel %vm349, %v347, %v344
        %v351 = vadd.f32 %v215, 1.0
        %v352 = vlog2.pop %v351
        %v353 = vmul.f32 %v352, 0.6931472
        %v354 = vmul.f32 -0.5, %v215
        %v355 = vadd.f32 %v354, 1.0
        %v356 = vmul.f32 %v355, %v215
        %v357 = vand.u32 2147483647, %v215
        %vm358 = vcmp.lt.f32.partialorder %v357, 0.0004427343
        %v359 = vsel %vm358, %v356, %v353
        %v360 = vstv %s150
        %v361 = vmul.f32 %v360, %v224
        %v362 = vmul.f32 %v360, %v233
        %v363 = vmul.f32 %v360, %v242
        %v364 = vmul.f32 %v360, %v251
        %v365 = vmul.f32 %v360, %v260
        %v366 = vmul.f32 %v360, %v269
        %v367 = vmul.f32 %v360, %v278
        %v368 = vmul.f32 %v360, %v287
        %v369 = vmul.f32 %v360, %v296
        %v370 = vmul.f32 %v360, %v305
        %v371 = vmul.f32 %v360, %v314
        %v372 = vmul.f32 %v360, %v323
        %v373 = vmul.f32 %v360, %v332
        %v374 = vmul.f32 %v360, %v341
        %v375 = vmul.f32 %v360, %v350
        %v376 = vmul.f32 %v360, %v359
        %v377 = vlog2.pop %v184
        %v378 = vmul.f32 %v377, 0.6931472
        %v379 = vlog2.pop %v185
        %v380 = vmul.f32 %v379, 0.6931472
        %v381 = vlog2.pop %v186
        %v382 = vmul.f32 %v381, 0.6931472
        %v383 = vlog2.pop %v187
        %v384 = vmul.f32 %v383, 0.6931472
        %v385 = vlog2.pop %v188
        %v386 = vmul.f32 %v385, 0.6931472
        %v387 = vlog2.pop %v189
        %v388 = vmul.f32 %v387, 0.6931472
        %v389 = vlog2.pop %v190
        %v390 = vmul.f32 %v389, 0.6931472
        %v391 = vlog2.pop %v191
        %v392 = vmul.f32 %v391, 0.6931472
        %v393 = vlog2.pop %v192
        %v394 = vmul.f32 %v393, 0.6931472
        %v395 = vlog2.pop %v193
        %v396 = vmul.f32 %v395, 0.6931472
        %v397 = vlog2.pop %v194
        %v398 = vmul.f32 %v397, 0.6931472
        %v399 = vlog2.pop %v195
        %v400 = vmul.f32 %v399, 0.6931472
        %v401 = vlog2.pop %v196
        %v402 = vmul.f32 %v401, 0.6931472
        %v403 = vlog2.pop %v197
        %v404 = vmul.f32 %v403, 0.6931472
        %v405 = vlog2.pop %v198
        %v406 = vmul.f32 %v405, 0.6931472
        %v407 = vlog2.pop %v199
        %v408 = vmul.f32 %v407, 0.6931472
        %v409 = vstv %s149
        %v410 = vmul.f32 %v409, %v378
        %v411 = vmul.f32 %v409, %v380
        %v412 = vmul.f32 %v409, %v382
        %v413 = vmul.f32 %v409, %v384
        %v414 = vmul.f32 %v409, %v386
        %v415 = vmul.f32 %v409, %v388
        %v416 = vmul.f32 %v409, %v390
        %v417 = vmul.f32 %v409, %v392
        %v418 = vmul.f32 %v409, %v394
        %v419 = vmul.f32 %v409, %v396
        %v420 = vmul.f32 %v409, %v398
        %v421 = vmul.f32 %v409, %v400
        %v422 = vmul.f32 %v409, %v402
        %v423 = vmul.f32 %v409, %v404
        %v424 = vmul.f32 %v409, %v406
        %v425 = vmul.f32 %v409, %v408
        %v426 = vadd.f32 %v361, %v410
        %v427 = vadd.f32 %v362, %v411
        %v428 = vadd.f32 %v363, %v412
        %v429 = vadd.f32 %v364, %v413
        %v430 = vadd.f32 %v365, %v414
        %v431 = vadd.f32 %v366, %v415
        %v432 = vadd.f32 %v367, %v416
        %v433 = vadd.f32 %v368, %v417
        %v434 = vadd.f32 %v369, %v418
        %v435 = vadd.f32 %v370, %v419
        %v436 = vadd.f32 %v371, %v420
        %v437 = vadd.f32 %v372, %v421
        %v438 = vadd.f32 %v373, %v422
        %v439 = vadd.f32 %v374, %v423
        %v440 = vadd.f32 %v375, %v424
        %v441 = vadd.f32 %v376, %v425
        %v442 = vmul.f32 %v426, 1.442695
        %v443 = vpow.pop %v442
        %v444 = vmul.f32 %v427, 1.442695
        %v445 = vpow.pop %v444
        %v446 = vmul.f32 %v428, 1.442695
        %v447 = vpow.pop %v446
        %v448 = vmul.f32 %v429, 1.442695
        %v449 = vpow.pop %v448
        %v450 = vmul.f32 %v430, 1.442695
        %v451 = vpow.pop %v450
        %v452 = vmul.f32 %v431, 1.442695
        %v453 = vpow.pop %v452
        %v454 = vmul.f32 %v432, 1.442695
        %v455 = vpow.pop %v454
        %v456 = vmul.f32 %v433, 1.442695
        %v457 = vpow.pop %v456
        %v458 = vmul.f32 %v434, 1.442695
        %v459 = vpow.pop %v458
        %v460 = vmul.f32 %v435, 1.442695
        %v461 = vpow.pop %v460
        %v462 = vmul.f32 %v436, 1.442695
        %v463 = vpow.pop %v462
        %v464 = vmul.f32 %v437, 1.442695
        %v465 = vpow.pop %v464
        %v466 = vmul.f32 %v438, 1.442695
        %v467 = vpow.pop %v466
        %v468 = vmul.f32 %v439, 1.442695
        %v469 = vpow.pop %v468
        %v470 = vmul.f32 %v440, 1.442695
        %v471 = vpow.pop %v470
        %v472 = vmul.f32 %v441, 1.442695
        %v473 = vpow.pop %v472
        %v474 = vstv %s151
        %v475 = vmul.f32 %v474, %v443
        %v476 = vmul.f32 %v474, %v445
        %v477 = vmul.f32 %v474, %v447
        %v478 = vmul.f32 %v474, %v449
        %v479 = vmul.f32 %v474, %v451
        %v480 = vmul.f32 %v474, %v453
        %v481 = vmul.f32 %v474, %v455
        %v482 = vmul.f32 %v474, %v457
        %v483 = vmul.f32 %v474, %v459
        %v484 = vmul.f32 %v474, %v461
        %v485 = vmul.f32 %v474, %v463
        %v486 = vmul.f32 %v474, %v465
        %v487 = vmul.f32 %v474, %v467
        %v488 = vmul.f32 %v474, %v469
        %v489 = vmul.f32 %v474, %v471
        %v490 = vmul.f32 %v474, %v473
        %491 = vst [vmem:[%s146] sm:$0xff] %v475
        %492 = vst [vmem:[%s146 + $0x8] sm:$0xff] %v476
        %493 = vst [vmem:[%s146 + $0x10] sm:$0xff] %v477
        %494 = vst [vmem:[%s146 + $0x18] sm:$0xff] %v478
        %495 = vst [vmem:[%s146 + $0x20] sm:$0xff] %v479
        %496 = vst [vmem:[%s146 + $0x28] sm:$0xff] %v480
        %497 = vst [vmem:[%s146 + $0x30] sm:$0xff] %v481
        %498 = vst [vmem:[%s146 + $0x38] sm:$0xff] %v482
        %499 = vst [vmem:[%s146 + $0x40] sm:$0xff] %v483
        %500 = vst [vmem:[%s146 + $0x48] sm:$0xff] %v484
        %501 = vst [vmem:[%s146 + $0x50] sm:$0xff] %v485
        %502 = vst [vmem:[%s146 + $0x58] sm:$0xff] %v486
        %503 = vst [vmem:[%s146 + $0x60] sm:$0xff] %v487
        %504 = vst [vmem:[%s146 + $0x68] sm:$0xff] %v488
        %505 = vst [vmem:[%s146 + $0x70] sm:$0xff] %v489
        %506 = vst [vmem:[%s146 + $0x78] sm:$0xff] %v490
        %s507 = sand.u32 %s61, 1
        %s508 = scalar_lea.sflag [#allocation6], %s507
        %s509 = sand.u32 %s61, 1
        %s510 = smul.addr %s509, 128
        %s511 = scalar_lea.vmem [#allocation7], %s510
        // Predicated region
        $region29: #{tpu_custom_call.1} parent=23 // pred_check
          %p512 = pneg %p71
        $region30: #{tpu_custom_call.1} parent=23 // pred_check_branch
          %514 = sbr.rel (%p512) target = $region32
        $region31: #{tpu_custom_call.1} parent=23 // pred_region
          %s515 = smul.u32 2, %s27
          %517 = vsyncadd %s508, 0
          %s518 = smul.addr %s515, 8
          %s519 = smul.addr %s518, 8
          %s520 = scalar_lea.hbm %s2, %s519
          %s521 = sshll.u32 %s511, 4
          %s522 = int_to_ptr.vmem [resolvable:$true] %s521
          %s523 = sshll.u32 %s520, 4
          %s524 = int_to_ptr.hbm [resolvable:$true] %s523
          %529 = dma.vmem_to_hbm [thread:$0]  %s522, 2048, %s524, %s508, 1024, 1024, 64
        $region32: #{tpu_custom_call.1} parent=23 // pred_fallthru
          _
      $region24: #{tpu_custom_call.1} parent=5 // pred_fallthru
        _
      %p530 = scmp.le.s32.totalorder 2, %s22
      // Predicated region
      $region33: #{tpu_custom_call.1} parent=5 // pred_check
        %p531 = pneg %p530
      $region34: #{tpu_custom_call.1} parent=5 // pred_check_branch
        %533 = sbr.rel (%p531) target = $region36
      $region35: #{tpu_custom_call.1} parent=5 // pred_region
        %s534 = ssub.s32 %s22, 2
        // Predicated region
        $region37: #{tpu_custom_call.1} parent=35 // pred_check
          %p535 = pneg %p77
        $region38: #{tpu_custom_call.1} parent=35 // pred_check_branch
          %537 = sbr.rel (%p535) target = $region40
        $region39: #{tpu_custom_call.1} parent=35 // pred_region
          %s538 = sand.u32 %s62, 1
          %s539 = scalar_lea.sflag [#allocation6], %s538
          %s540 = sand.u32 %s62, 1
          %s541 = smul.addr %s540, 128
          %s542 = scalar_lea.vmem [#allocation7], %s541
          %544 = dma.done %s539, 2048
        $region40: #{tpu_custom_call.1} parent=35 // pred_fallthru
          _
      $region36: #{tpu_custom_call.1} parent=5 // pred_fallthru
        _
    $region6: #{tpu_custom_call.1} parent=1 // loop_footer
      %s26 = sadd.s32 1, %s22
    $region7: #{tpu_custom_call.1} parent=1 // loop_footer_branch
      %21 = sbr.rel target = $region3
    $region8: #{tpu_custom_call.1} parent=1 // loop_exit
      _
    %545 = vsyncpa [#allocation5], 1
    %s546 = scalar_lea.sflag [#allocation5], 1
    %547 = vsyncpa %s546, 1
    %548 = vsyncpa [#allocation6], 1
    %s549 = scalar_lea.sflag [#allocation6], 1
    %550 = vsyncpa %s549, 1

</llo_original>
